<compile_context>
chip_gen: v7x
topology: tpu7x:2x2x1
jax: 0.10.0
libtpu: 0.0.40
codegen_flags: <defaults>
</compile_context>

<pallas_src>
import jax
import jax.numpy as jnp
from jax import lax
from jax.experimental import pallas as pl
from jax.experimental.pallas import tpu as pltpu


def _round_up(x, m):
    return (x + m - 1) // m * m


def siamese_kernel(x1_ref, x2_ref, w1_ref, b1_ref, w2_ref, out_ref):
    w1 = w1_ref[...]          # (F, HP)   first-layer weights, lane-padded
    b1 = b1_ref[...]          # (1, HP)
    w2 = w2_ref[...]          # (1, HP)   second-layer weights as a row

    # First layer for both branches (shared W1 -> staged MXU weights reused).
    h1 = jnp.dot(x1_ref[...], w1, preferred_element_type=jnp.float32) + b1
    h2 = jnp.dot(x2_ref[...], w1, preferred_element_type=jnp.float32) + b1
    d = jnp.maximum(h1, 0.0) - jnp.maximum(h2, 0.0)          # (TB, HP)

    # Second layer on the difference (b2 cancels). Contracting the hidden axis
    # of d against the w2 row yields (1, TB): batch lands on lanes, giving a
    # lane-dense, unmasked store.
    out_ref[...] = lax.dot_general(
        w2, d, (((1,), (1,)), ((), ())),
        preferred_element_type=jnp.float32,
    ).astype(out_ref.dtype)


def siamese_forward(x1, x2, w1, b1, w2, b2=None, *, tb=1024):
    """Returns o1 - o2 (shape (B, 1)). b2 accepted for API parity but cancels."""
    del b2  # mathematically cancels in o1 - o2
    B, F = x1.shape
    H = w1.shape[1]
    HP = _round_up(max(H, 128), 128)       # lane-padded hidden width

    # Zero-pad the (tiny) weights to a clean 128-lane hidden layout.
    w1p = jnp.zeros((F, HP), jnp.float32).at[:, :H].set(w1.astype(jnp.float32))
    b1p = jnp.zeros((1, HP), jnp.float32).at[:, :H].set(
        b1.reshape(1, H).astype(jnp.float32))
    w2p = jnp.zeros((1, HP), jnp.float32).at[:, :H].set(
        w2.reshape(1, H).astype(jnp.float32))

    # Batch tiling: TB is a multiple of 128 whenever more than one grid step is
    # needed (keeps the output block lane-aligned); otherwise one full tile.
    tb = max(128, (int(tb) // 128) * 128)
    TB = min(tb, _round_up(B, 8))
    Bp = _round_up(B, TB)
    if Bp != B:
        pad = ((0, Bp - B), (0, 0))
        x1 = jnp.pad(x1, pad)
        x2 = jnp.pad(x2, pad)
    grid = (Bp // TB,)

    out_row = pl.pallas_call(
        siamese_kernel,
        out_shape=jax.ShapeDtypeStruct((1, Bp), jnp.float32),
        grid=grid,
        in_specs=[
            pl.BlockSpec((TB, F), lambda i: (i, 0)),    # x1 batch tile
            pl.BlockSpec((TB, F), lambda i: (i, 0)),    # x2 batch tile
            pl.BlockSpec((F, HP), lambda i: (0, 0)),    # W1 (VMEM-resident)
            pl.BlockSpec((1, HP), lambda i: (0, 0)),    # b1 (VMEM-resident)
            pl.BlockSpec((1, HP), lambda i: (0, 0)),    # w2 row (VMEM-resident)
        ],
        out_specs=pl.BlockSpec((1, TB), lambda i: (0, i)),
        compiler_params=pltpu.CompilerParams(
            dimension_semantics=("parallel",),
        ),
    )(x1, x2, w1p, b1p, w2p)

    return out_row[0, :B, None]            # -> (B, 1), matching the torch output


def init_params(key):
    # Deterministic init mimicking torch.nn.Linear default U[-1/sqrt(fan_in), ...].
    k1, k2, k3, k4 = jax.random.split(key, 4)
    lim1 = 1.0 / jnp.sqrt(42.0)
    lim2 = 1.0 / jnp.sqrt(30.0)
    w1 = jax.random.uniform(k1, (42, 30), jnp.float32, -lim1, lim1)  # (in, out)
    b1 = jax.random.uniform(k2, (1, 30), jnp.float32, -lim1, lim1)
    w2 = jax.random.uniform(k3, (30, 1), jnp.float32, -lim2, lim2)
    b2 = jax.random.uniform(k4, (1, 1), jnp.float32, -lim2, lim2)
    return w1, b1, w2, b2


if __name__ == "__main__":
    key = jax.random.PRNGKey(0)
    kx1, kx2, kp = jax.random.split(key, 3)

    B = 8  # small batch, 42 input features (fixed by the module)
    x1 = jax.random.normal(kx1, (B, 42), jnp.float32)
    x2 = jax.random.normal(kx2, (B, 42), jnp.float32)
    w1, b1, w2, b2 = init_params(kp)

    out = jax.block_until_ready(siamese_forward(x1, x2, w1, b1, w2, b2))

    # Pure-JAX reference (keeps the redundant b2, as in the PyTorch module).
    def ref_fwd(a, b):
        def branch(x):
            h = jnp.maximum(x @ w1 + b1, 0.0)
            return h @ w2 + b2
        return branch(a) - branch(b)

    ref = ref_fwd(x1, x2)
    assert out.shape == (B, 1)
    assert jnp.allclose(out, ref, atol=1e-4, rtol=1e-4)

    # Exercise the tiled + padded path (multiple grid steps, batch padding).
    B2 = 300
    kx3, kx4 = jax.random.split(kx1)
    y1 = jax.random.normal(kx3, (B2, 42), jnp.float32)
    y2 = jax.random.normal(kx4, (B2, 42), jnp.float32)
    out2 = jax.block_until_ready(siamese_forward(y1, y2, w1, b1, w2, b2, tb=128))
    ref2 = ref_fwd(y1, y2)
    assert out2.shape == (B2, 1)
    assert jnp.allclose(out2, ref2, atol=1e-4, rtol=1e-4)

    print("KERNEL_OK")
</pallas_src>

<mosaic_0001>
module attributes {stable_mosaic.version = 11 : i64} {
  func.func @siamese_kernel(%arg0: i32, %arg1: memref<8x42xf32, #tpu.memory_space<vmem>>, %arg2: memref<8x42xf32, #tpu.memory_space<vmem>>, %arg3: memref<42x128xf32, #tpu.memory_space<vmem>>, %arg4: memref<1x128xf32, #tpu.memory_space<vmem>>, %arg5: memref<1x128xf32, #tpu.memory_space<vmem>>, %arg6: memref<1x8xf32, #tpu.memory_space<vmem>>) attributes {dimension_semantics = [#tpu.dimension_semantics<parallel>], iteration_bounds = array<i64: 1>, scalar_prefetch = 0 : i64, scratch_operands = 0 : i64, tpu.core_type = #tpu.core_type<tc>, window_params = [{transform_indices = @transform_0, window_bounds = array<i64: 8, 42>}, {transform_indices = @transform_1, window_bounds = array<i64: 8, 42>}, {pipeline_mode = #tpu.pipeline_mode<synchronous>, transform_indices = @transform_2, window_bounds = array<i64: 42, 128>}, {pipeline_mode = #tpu.pipeline_mode<synchronous>, transform_indices = @transform_3, window_bounds = array<i64: 1, 128>}, {pipeline_mode = #tpu.pipeline_mode<synchronous>, transform_indices = @transform_4, window_bounds = array<i64: 1, 128>}, {transform_indices = @transform_5, window_bounds = array<i64: 1, 8>}]} {
    %c0 = arith.constant 0 : index
    %c0_0 = arith.constant 0 : index
    %0 = vector.load %arg3[%c0, %c0_0] : memref<42x128xf32, #tpu.memory_space<vmem>>, vector<42x128xf32>
    %c0_1 = arith.constant 0 : index
    %c0_2 = arith.constant 0 : index
    %1 = vector.load %arg4[%c0_1, %c0_2] : memref<1x128xf32, #tpu.memory_space<vmem>>, vector<1x128xf32>
    %c0_3 = arith.constant 0 : index
    %c0_4 = arith.constant 0 : index
    %2 = vector.load %arg5[%c0_3, %c0_4] : memref<1x128xf32, #tpu.memory_space<vmem>>, vector<1x128xf32>
    %c0_5 = arith.constant 0 : index
    %c0_6 = arith.constant 0 : index
    %3 = vector.load %arg1[%c0_5, %c0_6] : memref<8x42xf32, #tpu.memory_space<vmem>>, vector<8x42xf32>
    %cst = arith.constant dense<0.000000e+00> : vector<8x128xf32>
    %4 = tpu.matmul %3, %0, %cst {dimension_numbers = #tpu.dot_dimension_numbers<[1], [0], [0], [1], [0, 0, 1, 1], [], []>} : vector<8x42xf32>, vector<42x128xf32>, vector<8x128xf32> -> vector<8x128xf32>
    %5 = vector.broadcast %1 : vector<1x128xf32> to vector<8x128xf32>
    %6 = arith.addf %4, %5 : vector<8x128xf32>
    %c0_7 = arith.constant 0 : index
    %c0_8 = arith.constant 0 : index
    %7 = vector.load %arg2[%c0_7, %c0_8] : memref<8x42xf32, #tpu.memory_space<vmem>>, vector<8x42xf32>
    %cst_9 = arith.constant dense<0.000000e+00> : vector<8x128xf32>
    %8 = tpu.matmul %7, %0, %cst_9 {dimension_numbers = #tpu.dot_dimension_numbers<[1], [0], [0], [1], [0, 0, 1, 1], [], []>} : vector<8x42xf32>, vector<42x128xf32>, vector<8x128xf32> -> vector<8x128xf32>
    %9 = vector.broadcast %1 : vector<1x128xf32> to vector<8x128xf32>
    %10 = arith.addf %8, %9 : vector<8x128xf32>
    %cst_10 = arith.constant 0.000000e+00 : f32
    %11 = vector.broadcast %cst_10 : f32 to vector<8x128xf32>
    %12 = arith.maximumf %6, %11 : vector<8x128xf32>
    %cst_11 = arith.constant 0.000000e+00 : f32
    %13 = vector.broadcast %cst_11 : f32 to vector<8x128xf32>
    %14 = arith.maximumf %10, %13 : vector<8x128xf32>
    %15 = arith.subf %12, %14 : vector<8x128xf32>
    %cst_12 = arith.constant dense<0.000000e+00> : vector<1x8xf32>
    %16 = tpu.matmul %2, %15, %cst_12 {dimension_numbers = #tpu.dot_dimension_numbers<[1], [1], [0], [0], [0, 0, 1, 0], [], []>} : vector<1x128xf32>, vector<8x128xf32>, vector<1x8xf32> -> vector<1x8xf32>
    %c0_13 = arith.constant 0 : index
    %c0_14 = arith.constant 0 : index
    %17 = vector.load %arg6[%c0_13, %c0_14] : memref<1x8xf32, #tpu.memory_space<vmem>>, vector<1x8xf32>
    tpu.vector_store %arg6[%c0_13, %c0_14], %16 {strides = array<i32>} : memref<1x8xf32, #tpu.memory_space<vmem>>, vector<1x8xf32>,
    return
  }
  func.func @transform_0(%arg0: i32) -> (i32, i32) {
    %c0_i32 = arith.constant 0 : i32
    %c0_i32_0 = arith.constant 0 : i32
    return %arg0, %c0_i32 : i32, i32
  }
  func.func @transform_1(%arg0: i32) -> (i32, i32) {
    %c0_i32 = arith.constant 0 : i32
    %c0_i32_0 = arith.constant 0 : i32
    return %arg0, %c0_i32 : i32, i32
  }
  func.func @transform_2(%arg0: i32) -> (i32, i32) {
    %c0_i32 = arith.constant 0 : i32
    %c0_i32_0 = arith.constant 0 : i32
    %c0_i32_1 = arith.constant 0 : i32
    return %c0_i32, %c0_i32_0 : i32, i32
  }
  func.func @transform_3(%arg0: i32) -> (i32, i32) {
    %c0_i32 = arith.constant 0 : i32
    %c0_i32_0 = arith.constant 0 : i32
    %c0_i32_1 = arith.constant 0 : i32
    return %c0_i32, %c0_i32_0 : i32, i32
  }
  func.func @transform_4(%arg0: i32) -> (i32, i32) {
    %c0_i32 = arith.constant 0 : i32
    %c0_i32_0 = arith.constant 0 : i32
    %c0_i32_1 = arith.constant 0 : i32
    return %c0_i32, %c0_i32_0 : i32, i32
  }
  func.func @transform_5(%arg0: i32) -> (i32, i32) {
    %c0_i32 = arith.constant 0 : i32
    %c0_i32_0 = arith.constant 0 : i32
    return %c0_i32, %arg0 : i32, i32
  }
}

</mosaic_0001>

<llo_original>
// kernel: tpu_custom_call.1
$region0: #{tpu_custom_call.1}
  #allocation0 [shape = 'u32[]', space=smem, size = 0x4, offset = 0x4, fixed_abs, tag = 'smem constant byte address 0x4 - core index']
  #allocation1 [shape = 'u32[144,128]{1,0:T(1,128)}', space=vmem, size = 0x12000, scoped, tag = 'internal scratch']
  %s0 = inlined_call_operand.hbm [shape: f32[8,42], index: 0, kind: input, shape index: {}]
  %s1 = inlined_call_operand.hbm [shape: f32[8,42], index: 1, kind: input, shape index: {}]
  %s2 = inlined_call_operand.hbm [shape: f32[42,128], index: 2, kind: input, shape index: {}]
  %s3 = inlined_call_operand.vmem [shape: f32[1,128], index: 3, kind: input, shape index: {}]
  %s4 = inlined_call_operand.vmem [shape: f32[1,128], index: 4, kind: input, shape index: {}]
  %s5 = inlined_call_operand.hbm [shape: f32[1,8], index: 5, kind: output, shape index: {}]
  %s6 = sld [smem:[#allocation0]]
  $region42: #{tpu_custom_call.1} parent=0
    _
  %s8 = ssub.s32 1, %s6
  %s9 = scalar_select 0, %s8, %s6
  $region1: #{tpu_custom_call.1} parent=0
    #allocation2 [shape = 'u8[4096]{0}', space=vmem, size = 0x1000, scoped, tag = 'input window, operand 0, single buffered']
    #allocation3 [shape = 's32[1]{0}', space=sflag, size = 0x4, scoped, tag = 'scoped memory for tpu_custom_call.1']
    #allocation4 [shape = 's32[1]{0}', space=sflag, size = 0x4, scoped, tag = 'scoped memory for tpu_custom_call.1']
    #allocation5 [shape = 'u8[4096]{0}', space=vmem, size = 0x1000, scoped, tag = 'input window, operand 1, single buffered']
    #allocation6 [shape = 's32[1]{0}', space=sflag, size = 0x4, scoped, tag = 'scoped memory for tpu_custom_call.1']
    #allocation7 [shape = 'u8[24576]{0}', space=vmem, size = 0x6000, scoped, tag = 'input window, operand 2, single buffered']
    #allocation8 [shape = 'u8[512]{0}', space=vmem, size = 0x400, scoped, tag = 'output window, operand 0, single buffered']
    %10 = vsyncpa [#allocation3], 0
    %11 = vsyncpa [#allocation6], 0
    %12 = vsyncpa [#allocation4], 0
    // Predicated region
    $region2: #{tpu_custom_call.1} parent=1 // pred_check
      _
    $region3: #{tpu_custom_call.1} parent=1 // pred_check_branch
      %14 = sbr.rel (0) target = $region5
    $region4: #{tpu_custom_call.1} parent=1 // pred_region
      %s16 = ssub.s32 128, 128
      %17 = vsyncadd [#allocation3], %s16
      %s19 = sshll.u32 [#allocation2], 4
      %s20 = int_to_ptr.vmem [resolvable:$true] %s19
      %22 = dma.hbm_to_vmem [thread:$0]  %s0, 128, %s20, [#allocation3]
    $region5: #{tpu_custom_call.1} parent=1 // pred_fallthru
      _
    // Predicated region
    $region6: #{tpu_custom_call.1} parent=1 // pred_check
      _
    $region7: #{tpu_custom_call.1} parent=1 // pred_check_branch
      %24 = sbr.rel (0) target = $region9
    $region8: #{tpu_custom_call.1} parent=1 // pred_region
      %s26 = ssub.s32 128, 128
      %27 = vsyncadd [#allocation6], %s26
      %s29 = sshll.u32 [#allocation5], 4
      %s30 = int_to_ptr.vmem [resolvable:$true] %s29
      %32 = dma.hbm_to_vmem [thread:$0]  %s1, 128, %s30, [#allocation6]
    $region9: #{tpu_custom_call.1} parent=1 // pred_fallthru
      _
    // Predicated region
    $region10: #{tpu_custom_call.1} parent=1 // pred_check
      _
    $region11: #{tpu_custom_call.1} parent=1 // pred_check_branch
      %34 = sbr.rel (0) target = $region13
    $region12: #{tpu_custom_call.1} parent=1 // pred_region
      %s36 = ssub.s32 768, 768
      %37 = vsyncadd [#allocation6], %s36
      %s38 = sshll.u32 [#allocation7], 4
      %s39 = int_to_ptr.vmem [resolvable:$true] %s38
      %44 = dma.hbm_to_vmem [thread:$0]  %s2, 768, %s39, [#allocation6], 128, 128, 8
    $region13: #{tpu_custom_call.1} parent=1 // pred_fallthru
      _
    // Predicated region
    $region14: #{tpu_custom_call.1} parent=1 // pred_check
      _
    $region15: #{tpu_custom_call.1} parent=1 // pred_check_branch
      %46 = sbr.rel (0) target = $region17
    $region16: #{tpu_custom_call.1} parent=1 // pred_region
      _
    $region17: #{tpu_custom_call.1} parent=1 // pred_fallthru
      _
    // Predicated region
    $region18: #{tpu_custom_call.1} parent=1 // pred_check
      _
    $region19: #{tpu_custom_call.1} parent=1 // pred_check_branch
      %48 = sbr.rel (0) target = $region21
    $region20: #{tpu_custom_call.1} parent=1 // pred_region
      _
    $region21: #{tpu_custom_call.1} parent=1 // pred_fallthru
      _
    // Predicated region
    $region22: #{tpu_custom_call.1} parent=1 // pred_check
      _
    $region23: #{tpu_custom_call.1} parent=1 // pred_check_branch
      %50 = sbr.rel (0) target = $region25
    $region24: #{tpu_custom_call.1} parent=1 // pred_region
      %51 = dma.done [#allocation3], 128
    $region25: #{tpu_custom_call.1} parent=1 // pred_fallthru
      _
    // Predicated region
    $region26: #{tpu_custom_call.1} parent=1 // pred_check
      _
    $region27: #{tpu_custom_call.1} parent=1 // pred_check_branch
      %53 = sbr.rel (0) target = $region29
    $region28: #{tpu_custom_call.1} parent=1 // pred_region
      %54 = dma.done [#allocation6], 128
    $region29: #{tpu_custom_call.1} parent=1 // pred_fallthru
      _
    // Predicated region
    $region30: #{tpu_custom_call.1} parent=1 // pred_check
      _
    $region31: #{tpu_custom_call.1} parent=1 // pred_check_branch
      %56 = sbr.rel (0) target = $region33
    $region32: #{tpu_custom_call.1} parent=1 // pred_region
      %57 = dma.done [#allocation6], 768
    $region33: #{tpu_custom_call.1} parent=1 // pred_fallthru
      _
    %v58 = vld [vmem:[#allocation7] sm:$0xff]
    %v59 = vld [vmem:[#allocation7 + $0x8] sm:$0xff]
    %v60 = vld [vmem:[#allocation7 + $0x10] sm:$0xff]
    %v61 = vld [vmem:[#allocation7 + $0x18] sm:$0xff]
    %v62 = vld [vmem:[#allocation7 + $0x20] sm:$0xff]
    %v63 = vld [vmem:[#allocation7 + $0x28] sm:$0x3]
    %v64 = vld [vmem:[%s3] sm:$0x1]
    %v65 = vld [vmem:[%s4] sm:$0x1]
    %v66 = vld [vmem:[#allocation2] sm:$0xff]
    %v68 = vlaneseq
    %v69 = vshrl.u32 %v68, 7
    %v70 = vsub.s32 0, %v69
    %v71 = vrot.slane %v64, %v70
    %vm73 = vcmask 343040
    %v75 = vsel %vm73, %v66, 0
    %vm77 = vcmask 1041408
    %v79 = vsel %vm77, %v63, 0
    %81 = vmatprep.subr.mxu0 0.0
    %82 = vmatpush1.msra.mxu0 %v58
    %83 = vmatprep.subr.mxu0 0.0
    %84 = vmatpush1.msra.mxu0 %v59
    %85 = vmatprep.subr.mxu0 0.0
    %86 = vmatpush1.msra.mxu0 %v60
    %87 = vmatprep.subr.mxu0 0.0
    %88 = vmatpush1.msra.mxu0 %v61
    %89 = vmatprep.subr.mxu0 0.0
    %90 = vmatpush1.msra.mxu0 %v62
    %91 = vmatprep.subr.mxu0 0.0
    %92 = vmatpush1.msra.mxu0 %v79
    %93 = vmatprep.subr.mxu0 0.0
    %94 = vmatpush1.msra.mxu0 0.0
    %95 = vmatprep.subr.mxu0 0.0
    %96 = vmatpush1.msra.mxu0 0.0
    %97 = vmatprep.subr.mxu0 0.0
    %98 = vmatpush1.msra.mxu0 0.0
    %99 = vmatprep.subr.mxu0 0.0
    %100 = vmatpush1.msra.mxu0 0.0
    %101 = vmatprep.subr.mxu0 0.0
    %102 = vmatpush1.msra.mxu0 0.0
    %103 = vmatprep.subr.mxu0 0.0
    %104 = vmatpush1.msra.mxu0 0.0
    %105 = vmatprep.subr.mxu0 0.0
    %106 = vmatpush1.msra.mxu0 0.0
    %107 = vmatprep.subr.mxu0 0.0
    %108 = vmatpush1.msra.mxu0 0.0
    %109 = vmatprep.subr.mxu0 0.0
    %110 = vmatpush1.msra.mxu0 0.0
    %111 = vmatprep.subr.mxu0 0.0
    %112 = vmatpush1.msra.mxu0 0.0
    %113 = vmatprep.subr.mxu0 0.0
    %114 = vmatpush1.msra.mxu0 0.0
    %115 = vmatprep.subr.mxu0 0.0
    %116 = vmatpush1.msra.mxu0 0.0
    %117 = vmatprep.subr.mxu0 0.0
    %118 = vmatpush1.msra.mxu0 0.0
    %119 = vmatprep.subr.mxu0 0.0
    %120 = vmatpush1.msra.mxu0 0.0
    %121 = vmatprep.subr.mxu0 0.0
    %122 = vmatpush1.msra.mxu0 0.0
    %123 = vmatprep.subr.mxu0 0.0
    %124 = vmatpush1.msra.mxu0 0.0
    %125 = vmatprep.subr.mxu0 0.0
    %126 = vmatpush1.msra.mxu0 0.0
    %127 = vmatprep.subr.mxu0 0.0
    %128 = vmatpush1.msra.mxu0 0.0
    %129 = vmatprep.subr.mxu0 0.0
    %130 = vmatpush1.msra.mxu0 0.0
    %131 = vmatprep.subr.mxu0 0.0
    %132 = vmatpush1.msra.mxu0 0.0
    %133 = vmatprep.subr.mxu0 0.0
    %134 = vmatpush1.msra.mxu0 0.0
    %135 = vmatprep.subr.mxu0 0.0
    %136 = vmatpush1.msra.mxu0 0.0
    %137 = vmatprep.subr.mxu0 0.0
    %138 = vmatpush1.msra.mxu0 0.0
    %139 = vmatprep.subr.mxu0 0.0
    %140 = vmatpush1.msra.mxu0 0.0
    %141 = vmatprep.subr.mxu0 0.0
    %142 = vmatpush1.msra.mxu0 0.0
    %143 = vmatprep.subr.mxu0 0.0
    %144 = vmatpush1.msra.mxu0 0.0
    %145 = vmatprep.mubr.f32.mxu0 0.0
    %146 = vmatmul.mubr.f32.gmra.mrb[0].mxu0 %v75
    %v147 = vpop.f32.mrb[0].mxu0
    %v148 = vadd.f32 %v71, %v147
    %v149 = vpop.f32.mrb[0].mxu0
    %150 = vdwg.mxu0
    %v151 = vld [vmem:[#allocation5] sm:$0xff]
    %v153 = vsel %vm73, %v151, 0
    %155 = vmatprep.subr.mxu0 0.0
    %156 = vmatpush1.msra.mxu0 %v58
    %157 = vmatprep.subr.mxu0 0.0
    %158 = vmatpush1.msra.mxu0 %v59
    %159 = vmatprep.subr.mxu0 0.0
    %160 = vmatpush1.msra.mxu0 %v60
    %161 = vmatprep.subr.mxu0 0.0
    %162 = vmatpush1.msra.mxu0 %v61
    %163 = vmatprep.subr.mxu0 0.0
    %164 = vmatpush1.msra.mxu0 %v62
    %165 = vmatprep.subr.mxu0 0.0
    %166 = vmatpush1.msra.mxu0 %v79
    %167 = vmatprep.subr.mxu0 0.0
    %168 = vmatpush1.msra.mxu0 0.0
    %169 = vmatprep.subr.mxu0 0.0
    %170 = vmatpush1.msra.mxu0 0.0
    %171 = vmatprep.subr.mxu0 0.0
    %172 = vmatpush1.msra.mxu0 0.0
    %173 = vmatprep.subr.mxu0 0.0
    %174 = vmatpush1.msra.mxu0 0.0
    %175 = vmatprep.subr.mxu0 0.0
    %176 = vmatpush1.msra.mxu0 0.0
    %177 = vmatprep.subr.mxu0 0.0
    %178 = vmatpush1.msra.mxu0 0.0
    %179 = vmatprep.subr.mxu0 0.0
    %180 = vmatpush1.msra.mxu0 0.0
    %181 = vmatprep.subr.mxu0 0.0
    %182 = vmatpush1.msra.mxu0 0.0
    %183 = vmatprep.subr.mxu0 0.0
    %184 = vmatpush1.msra.mxu0 0.0
    %185 = vmatprep.subr.mxu0 0.0
    %186 = vmatpush1.msra.mxu0 0.0
    %187 = vmatprep.subr.mxu0 0.0
    %188 = vmatpush1.msra.mxu0 0.0
    %189 = vmatprep.subr.mxu0 0.0
    %190 = vmatpush1.msra.mxu0 0.0
    %191 = vmatprep.subr.mxu0 0.0
    %192 = vmatpush1.msra.mxu0 0.0
    %193 = vmatprep.subr.mxu0 0.0
    %194 = vmatpush1.msra.mxu0 0.0
    %195 = vmatprep.subr.mxu0 0.0
    %196 = vmatpush1.msra.mxu0 0.0
    %197 = vmatprep.subr.mxu0 0.0
    %198 = vmatpush1.msra.mxu0 0.0
    %199 = vmatprep.subr.mxu0 0.0
    %200 = vmatpush1.msra.mxu0 0.0
    %201 = vmatprep.subr.mxu0 0.0
    %202 = vmatpush1.msra.mxu0 0.0
    %203 = vmatprep.subr.mxu0 0.0
    %204 = vmatpush1.msra.mxu0 0.0
    %205 = vmatprep.subr.mxu0 0.0
    %206 = vmatpush1.msra.mxu0 0.0
    %207 = vmatprep.subr.mxu0 0.0
    %208 = vmatpush1.msra.mxu0 0.0
    %209 = vmatprep.subr.mxu0 0.0
    %210 = vmatpush1.msra.mxu0 0.0
    %211 = vmatprep.subr.mxu0 0.0
    %212 = vmatpush1.msra.mxu0 0.0
    %213 = vmatprep.subr.mxu0 0.0
    %214 = vmatpush1.msra.mxu0 0.0
    %215 = vmatprep.subr.mxu0 0.0
    %216 = vmatpush1.msra.mxu0 0.0
    %217 = vmatprep.subr.mxu0 0.0
    %218 = vmatpush1.msra.mxu0 0.0
    %219 = vmatprep.mubr.f32.mxu0 0.0
    %220 = vmatmul.mubr.f32.gmra.mrb[0].mxu0 %v153
    %v221 = vpop.f32.mrb[0].mxu0
    %v222 = vadd.f32 %v71, %v221
    %v223 = vpop.f32.mrb[0].mxu0
    %224 = vdwg.mxu0
    %v225 = vmax.f32 %v148, 0.0
    %v226 = vmax.f32 %v222, 0.0
    %v227 = vsub.f32 %v225, %v226
    %228 = vmatprep.subr.mxu0 0.0
    %229 = vmatpush1.xpose.msra.mxu0 %v227
    %230 = vmatprep.subr.mxu0 0.0
    %231 = vmatpush1.xpose.msra.mxu0 0.0
    %232 = vmatprep.subr.mxu0 0.0
    %233 = vmatpush1.xpose.msra.mxu0 0.0
    %234 = vmatprep.subr.mxu0 0.0
    %235 = vmatpush1.xpose.msra.mxu0 0.0
    %236 = vmatprep.subr.mxu0 0.0
    %237 = vmatpush1.xpose.msra.mxu0 0.0
    %238 = vmatprep.subr.mxu0 0.0
    %239 = vmatpush1.xpose.msra.mxu0 0.0
    %240 = vmatprep.subr.mxu0 0.0
    %241 = vmatpush1.xpose.msra.mxu0 0.0
    %242 = vmatprep.subr.mxu0 0.0
    %243 = vmatpush1.xpose.msra.mxu0 0.0
    %244 = vmatprep.subr.mxu0 0.0
    %245 = vmatpush1.xpose.msra.mxu0 0.0
    %246 = vmatprep.subr.mxu0 0.0
    %247 = vmatpush1.xpose.msra.mxu0 0.0
    %248 = vmatprep.subr.mxu0 0.0
    %249 = vmatpush1.xpose.msra.mxu0 0.0
    %250 = vmatprep.subr.mxu0 0.0
    %251 = vmatpush1.xpose.msra.mxu0 0.0
    %252 = vmatprep.subr.mxu0 0.0
    %253 = vmatpush1.xpose.msra.mxu0 0.0
    %254 = vmatprep.subr.mxu0 0.0
    %255 = vmatpush1.xpose.msra.mxu0 0.0
    %256 = vmatprep.subr.mxu0 0.0
    %257 = vmatpush1.xpose.msra.mxu0 0.0
    %258 = vmatprep.subr.mxu0 0.0
    %259 = vmatpush1.xpose.msra.mxu0 0.0
    %260 = vmatprep.subr.mxu0 0.0
    %261 = vmatpush1.xpose.msra.mxu0 0.0
    %262 = vmatprep.subr.mxu0 0.0
    %263 = vmatpush1.xpose.msra.mxu0 0.0
    %264 = vmatprep.subr.mxu0 0.0
    %265 = vmatpush1.xpose.msra.mxu0 0.0
    %266 = vmatprep.subr.mxu0 0.0
    %267 = vmatpush1.xpose.msra.mxu0 0.0
    %268 = vmatprep.subr.mxu0 0.0
    %269 = vmatpush1.xpose.msra.mxu0 0.0
    %270 = vmatprep.subr.mxu0 0.0
    %271 = vmatpush1.xpose.msra.mxu0 0.0
    %272 = vmatprep.subr.mxu0 0.0
    %273 = vmatpush1.xpose.msra.mxu0 0.0
    %274 = vmatprep.subr.mxu0 0.0
    %275 = vmatpush1.xpose.msra.mxu0 0.0
    %276 = vmatprep.subr.mxu0 0.0
    %277 = vmatpush1.xpose.msra.mxu0 0.0
    %278 = vmatprep.subr.mxu0 0.0
    %279 = vmatpush1.xpose.msra.mxu0 0.0
    %280 = vmatprep.subr.mxu0 0.0
    %281 = vmatpush1.xpose.msra.mxu0 0.0
    %282 = vmatprep.subr.mxu0 0.0
    %283 = vmatpush1.xpose.msra.mxu0 0.0
    %284 = vmatprep.subr.mxu0 0.0
    %285 = vmatpush1.xpose.msra.mxu0 0.0
    %286 = vmatprep.subr.mxu0 0.0
    %287 = vmatpush1.xpose.msra.mxu0 0.0
    %288 = vmatprep.subr.mxu0 0.0
    %289 = vmatpush1.xpose.msra.mxu0 0.0
    %290 = vmatprep.subr.mxu0 0.0
    %291 = vmatpush1.xpose.msra.mxu0 0.0
    %292 = vmatprep.mubr.f32.mxu0 0.0
    %293 = vmatmul.mubr.f32.gmra.mrb[0].mxu0 %v65
    %v294 = vpop.f32.mrb[0].mxu0
    %v295 = vadd.f32 0.0, %v294
    %v296 = vpop.f32.mrb[0].mxu0
    %297 = vdwg.mxu0
    %vm298 = vcmask 57344
    %299 = vst.msk [vmem:[#allocation8] sm:$0x1] %vm298, %v295
    // Predicated region
    $region34: #{tpu_custom_call.1} parent=1 // pred_check
      _
    $region35: #{tpu_custom_call.1} parent=1 // pred_check_branch
      %301 = sbr.rel (0) target = $region37
    $region36: #{tpu_custom_call.1} parent=1 // pred_region
      %s303 = ssub.s32 16, 16
      %304 = vsyncadd [#allocation4], %s303
      %s306 = sshll.u32 [#allocation8], 4
      %s307 = int_to_ptr.vmem [resolvable:$true] %s306
      %309 = dma.vmem_to_hbm [thread:$0]  %s307, 16, %s5, [#allocation4]
    $region37: #{tpu_custom_call.1} parent=1 // pred_fallthru
      _
    // Predicated region
    $region38: #{tpu_custom_call.1} parent=1 // pred_check
      _
    $region39: #{tpu_custom_call.1} parent=1 // pred_check_branch
      %311 = sbr.rel (0) target = $region41
    $region40: #{tpu_custom_call.1} parent=1 // pred_region
      %312 = dma.done [#allocation4], 16
    $region41: #{tpu_custom_call.1} parent=1 // pred_fallthru
      _
    %313 = vsyncpa [#allocation3], 1
    %314 = vsyncpa [#allocation6], 1
    %315 = vsyncpa [#allocation4], 1

</llo_original>
